<compile_context>
chip_gen: v6e
topology: v6e:2x2x1
jax: 0.10.0
libtpu: 0.0.40
codegen_flags: <defaults>
</compile_context>

<pallas_src>
import functools

import jax
import jax.numpy as jnp
from jax.experimental import pallas as pl
from jax.experimental.pallas import tpu as pltpu


def _round_up(x, m):
    return (x + m - 1) // m * m


def _row_align(dtype):
    # sublane alignment: 8 rows for 32-bit operands, 16 for bf16 (2 rows pack
    # per 32-bit sublane).
    return max(8, 32 // jnp.dtype(dtype).itemsize)


# ---------------------------------------------------------------------------
# Kernel 1: row-tiled Linear (initial node embedding: node_embed -> bias_embed)
# ---------------------------------------------------------------------------
def _linear_kernel(x_ref, w_ref, b_ref, o_ref):
    acc = jnp.dot(x_ref[...], w_ref[...], preferred_element_type=jnp.float32)
    o_ref[...] = (acc + b_ref[...]).astype(o_ref.dtype)


def linear_rows(x, w, b, *, mxu_dtype=jnp.float32, out_dtype=jnp.float32,
                tile_rows=512):
    R, Cin = x.shape
    Cout = w.shape[1]
    align = _row_align(mxu_dtype)
    if tile_rows >= R:
        t, Rp = R, R
    else:
        t = max(align, (tile_rows // align) * align)
        if t >= R:
            t, Rp = R, R
        else:
            Rp = _round_up(R, t)
    xc = x.astype(mxu_dtype)
    xp = xc if Rp == R else jnp.pad(xc, ((0, Rp - R), (0, 0)))
    out = pl.pallas_call(
        _linear_kernel,
        out_shape=jax.ShapeDtypeStruct((Rp, Cout), out_dtype),
        grid=(Rp // t,),
        in_specs=[
            pl.BlockSpec((t, Cin), lambda i: (i, 0)),
            pl.BlockSpec((Cin, Cout), lambda i: (0, 0)),
            pl.BlockSpec((1, Cout), lambda i: (0, 0)),
        ],
        out_specs=pl.BlockSpec((t, Cout), lambda i: (i, 0)),
        compiler_params=pltpu.CompilerParams(dimension_semantics=("parallel",)),
    )(xp, w.astype(mxu_dtype), b.astype(jnp.float32))
    return out[:R]


# ---------------------------------------------------------------------------
# Kernel 2: trunk (2x Linear+ReLU) + residual + final Linear + LayerNorm.
# Concat-free: split-weight matmuls.  node_i broadcast done in-kernel via an
# iota-generated one-hot matmul against the per-tile node_e slab.
# ---------------------------------------------------------------------------
def _edge_transition_kernel(edge_ref, nj_ref, node_ref,
                            w1e_ref, w1i_ref, w1j_ref, b1_ref,
                            w2_ref, b2_ref,
                            wf_ref, bf_ref,
                            g_ref, beta_ref, out_ref, *, K, Ce, Cb, Co):
    f32 = jnp.float32
    cdt = edge_ref.dtype                                   # MXU operand dtype

    edge = edge_ref[...]                                   # (T, Ce)
    nj = nj_ref[...]                                       # (T, Cb) gathered neighbours
    node = node_ref[...]                                   # (G, Cb) node_e for tile
    T = edge.shape[0]
    G = node.shape[0]

    # Broadcast each node_i row over its K neighbour rows.  The one-hot
    # "repeat" operator is generated in-kernel from iota (no HBM stream); the
    # matmul copies rows exactly (one nonzero 1.0 per row) in any dtype.
    rows = jax.lax.broadcasted_iota(jnp.int32, (T, G), 0) // K
    cols = jax.lax.broadcasted_iota(jnp.int32, (T, G), 1)
    rep = jnp.where(rows == cols, 1.0, 0.0).astype(cdt)
    ni = jnp.dot(rep, node, preferred_element_type=f32).astype(cdt)  # (T, Cb)

    # trunk layer 1 == cat([edge, ni, nj], -1) @ w1 + b1, done split-wise
    h1 = jnp.dot(edge, w1e_ref[...], preferred_element_type=f32)
    h1 = h1 + jnp.dot(ni, w1i_ref[...], preferred_element_type=f32)
    h1 = h1 + jnp.dot(nj, w1j_ref[...], preferred_element_type=f32)
    h1 = jnp.maximum(h1 + b1_ref[...], 0.0).astype(cdt)              # (T, Hp)

    # trunk layer 2
    h2 = jnp.dot(h1, w2_ref[...], preferred_element_type=f32)
    h2 = jnp.maximum(h2 + b2_ref[...], 0.0).astype(cdt)              # (T, Hp)

    # final_layer(h2 + h): residual expanded split-wise using in-kernel slices
    # of the single wf copy (no duplicated wf DMA traffic).
    y = jnp.dot(h2, wf_ref[...], preferred_element_type=f32)
    y = y + jnp.dot(edge, wf_ref[pl.ds(0, Ce), :], preferred_element_type=f32)
    y = y + jnp.dot(ni, wf_ref[pl.ds(Ce, Cb), :], preferred_element_type=f32)
    y = y + jnp.dot(nj, wf_ref[pl.ds(Ce + Cb, Cb), :], preferred_element_type=f32)
    y = y + bf_ref[...]                                               # (T, Cop) f32

    # LayerNorm over the *true* Co channels only (eps=1e-5, biased variance).
    # Columns Co..Cop of y are exactly zero (zero-padded weights/bias), so the
    # full-width sums equal the true-channel sums; divide by Co, not Cop.
    inv_c = 1.0 / Co
    s1 = jnp.sum(y, axis=-1, keepdims=True)
    s2 = jnp.sum(y * y, axis=-1, keepdims=True)
    mean = s1 * inv_c
    var = jnp.maximum(s2 * inv_c - mean * mean, 0.0)
    out_ref[...] = ((y - mean) * jax.lax.rsqrt(var + 1e-5) * g_ref[...]
                    + beta_ref[...]).astype(out_ref.dtype)


# ---------------------------------------------------------------------------
# Tiling helper
# ---------------------------------------------------------------------------
def _choose_group_tile(groups, K, target_rows, align, min_grid_steps):
    gpt = max(1, target_rows // K)
    if min_grid_steps > 1:                       # v7x: keep >= 2 steps so both
        gpt = min(gpt, max(1, -(-groups // min_grid_steps)))   # TCs get work
    gpt = max(align, (gpt // align) * align)     # sublane-aligned group tiles
    gpt = min(gpt, _round_up(groups, align))     # don't over-pad tiny problems
    padded_groups = _round_up(groups, gpt)
    return gpt, padded_groups


# ---------------------------------------------------------------------------
# Full forward
# ---------------------------------------------------------------------------
def edge_transition_forward(params, node_emb, edge_emb, E_idx, *,
                            mxu_dtype=jnp.bfloat16,
                            target_tile_rows=1024,
                            min_grid_steps=1,
                            vmem_limit_bytes=None):
    B, N, _ = node_emb.shape
    K = E_idx.shape[-1]
    Cb = params["w0"].shape[1]
    Ce = edge_emb.shape[-1]
    Co = params["wf"].shape[1]
    H = params["w1"].shape[0]                    # Ce + 2*Cb
    groups = B * N
    M = groups * K

    Hp = _round_up(H, 128)                       # MXU/lane-aligned hidden width
    Cop = _round_up(Co, 128)                     # lane-dense output width

    # initial node embedding (row-tiled Pallas linear); keep node_e in the MXU
    # dtype so the XLA neighbour-gather round-trip moves half the bytes in bf16.
    node_e = linear_rows(node_emb.reshape(groups, -1), params["w0"], params["b0"],
                         mxu_dtype=mxu_dtype, out_dtype=mxu_dtype)

    # neighbour gather (linear in N; no (B, N, N, Cb) intermediate)
    node_e3 = node_e.reshape(B, N, Cb)
    idx = E_idx.reshape(B, N * K)[..., None].astype(jnp.int32)
    nj_flat = jnp.take_along_axis(node_e3, idx, axis=1).reshape(M, Cb)
    # TODO(synk): the neighbour gather itself stays in XLA (take_along_axis);
    # an in-kernel row gather (PrefetchScalarGridSpec + per-row DMA) is the
    # remaining HBM-traffic optimisation for v5e.

    align = _row_align(mxu_dtype)
    gpt, padded_groups = _choose_group_tile(groups, K, target_tile_rows, align,
                                            min_grid_steps)
    T = gpt * K                                  # edge rows per tile
    M_pad = padded_groups * K

    edge_flat = edge_emb.reshape(M, Ce).astype(mxu_dtype)
    if M_pad != M:
        edge_flat = jnp.pad(edge_flat, ((0, M_pad - M), (0, 0)))
        nj_flat = jnp.pad(nj_flat, ((0, M_pad - M), (0, 0)))
    node_pad = (node_e if padded_groups == groups
                else jnp.pad(node_e, ((0, padded_groups - groups), (0, 0))))

    # Weight prep: split w1 along the concat boundary [edge | node_i | node_j],
    # zero-pad H -> Hp and Co -> Cop, cast MXU operands; biases/LN params f32.
    def padc(a, w):
        return a if a.shape[1] == w else jnp.pad(a, ((0, 0), (0, w - a.shape[1])))

    def padr(a, h):
        return a if a.shape[0] == h else jnp.pad(a, ((0, h - a.shape[0]), (0, 0)))

    w1, w2, wf = params["w1"], params["w2"], params["wf"]
    w1e = padc(w1[:Ce], Hp).astype(mxu_dtype)
    w1i = padc(w1[Ce:Ce + Cb], Hp).astype(mxu_dtype)
    w1j = padc(w1[Ce + Cb:], Hp).astype(mxu_dtype)
    b1 = padc(params["b1"], Hp).astype(jnp.float32)
    w2p = padc(padr(w2, Hp), Hp).astype(mxu_dtype)
    b2 = padc(params["b2"], Hp).astype(jnp.float32)
    wfp = padc(padr(wf, Hp), Cop).astype(mxu_dtype)
    bf = padc(params["bf"], Cop).astype(jnp.float32)
    gamma = padc(params["gamma"], Cop).astype(jnp.float32)
    beta = padc(params["beta"], Cop).astype(jnp.float32)

    def row_spec(c):
        return pl.BlockSpec((T, c), lambda i: (i, 0))

    def full_spec(r, c):
        return pl.BlockSpec((r, c), lambda i: (0, 0))

    kernel = functools.partial(_edge_transition_kernel, K=K, Ce=Ce, Cb=Cb, Co=Co)

    out = pl.pallas_call(
        kernel,
        out_shape=jax.ShapeDtypeStruct((M_pad, Cop), jnp.float32),
        grid=(padded_groups // gpt,),
        in_specs=[
            row_spec(Ce),                                 # edge rows
            row_spec(Cb),                                 # gathered neighbour rows
            pl.BlockSpec((gpt, Cb), lambda i: (i, 0)),    # node_e rows for tile
            full_spec(Ce, Hp), full_spec(Cb, Hp), full_spec(Cb, Hp),
            full_spec(1, Hp),
            full_spec(Hp, Hp), full_spec(1, Hp),
            full_spec(Hp, Cop), full_spec(1, Cop),
            full_spec(1, Cop), full_spec(1, Cop),
        ],
        out_specs=row_spec(Cop),
        compiler_params=pltpu.CompilerParams(
            dimension_semantics=("parallel",),
            vmem_limit_bytes=vmem_limit_bytes),
    )(edge_flat, nj_flat, node_pad,
      w1e, w1i, w1j, b1, w2p, b2, wfp, bf, gamma, beta)

    return out[:M, :Co].reshape(B, N, K, Co)


# ---------------------------------------------------------------------------
# Deterministic parameter init (PyTorch nn.Linear-style uniform bounds)
# ---------------------------------------------------------------------------
def init_params(key, node_embed_size, edge_embed_in, edge_embed_out,
                node_dilation=2):
    bias_embed = node_embed_size // node_dilation
    hidden = bias_embed * 2 + edge_embed_in

    def linear(k, fan_in, fan_out):
        k1, k2 = jax.random.split(k)
        bound = 1.0 / (fan_in ** 0.5)
        w = jax.random.uniform(k1, (fan_in, fan_out), jnp.float32, -bound, bound)
        b = jax.random.uniform(k2, (1, fan_out), jnp.float32, -bound, bound)
        return w, b

    ks = jax.random.split(key, 4)
    w0, b0 = linear(ks[0], node_embed_size, bias_embed)   # initial_embed
    w1, b1 = linear(ks[1], hidden, hidden)                # trunk[0]
    w2, b2 = linear(ks[2], hidden, hidden)                # trunk[2]
    wf, bf = linear(ks[3], hidden, edge_embed_out)        # final_layer
    return {
        "w0": w0, "b0": b0,
        "w1": w1, "b1": b1,
        "w2": w2, "b2": b2,
        "wf": wf, "bf": bf,
        "gamma": jnp.ones((1, edge_embed_out), jnp.float32),
        "beta": jnp.zeros((1, edge_embed_out), jnp.float32),
    }


# ---------------------------------------------------------------------------
# Pure-JAX reference (literal transcription of the PyTorch module)
# ---------------------------------------------------------------------------
def reference_forward(params, node_emb, edge_emb, E_idx):
    B, N, _ = node_emb.shape
    K = E_idx.shape[-1]
    node_e = node_emb @ params["w0"] + params["b0"][0]
    Cb = node_e.shape[-1]
    ni = jnp.broadcast_to(node_e[:, :, None, :], (B, N, N, Cb))
    njall = jnp.broadcast_to(node_e[:, None, :, :], (B, N, N, Cb))
    edge_bias = jnp.concatenate([ni, njall], axis=-1)
    gathered = jnp.take_along_axis(
        edge_bias, E_idx[..., None].astype(jnp.int32), axis=2)   # (B,N,K,2Cb)
    h = jnp.concatenate([edge_emb, gathered], axis=-1)
    h1 = jnp.maximum(h @ params["w1"] + params["b1"][0], 0.0)
    h2 = jnp.maximum(h1 @ params["w2"] + params["b2"][0], 0.0)
    y = (h2 + h) @ params["wf"] + params["bf"][0]
    mean = jnp.mean(y, -1, keepdims=True)
    var = jnp.mean((y - mean) ** 2, -1, keepdims=True)
    return (y - mean) / jnp.sqrt(var + 1e-5) * params["gamma"][0] + params["beta"][0]


if __name__ == "__main__":
    # Small shapes: B=2, N_rigid=7, K=4 neighbors,
    # node_embed_size=32, edge_embed_in=16, edge_embed_out=32, node_dilation=2.
    B, N, K = 2, 7, 4
    NODE_C, EDGE_IN, EDGE_OUT = 32, 16, 32

    key = jax.random.PRNGKey(0)
    k_p, k_node, k_edge, k_idx = jax.random.split(key, 4)

    params = init_params(k_p, NODE_C, EDGE_IN, EDGE_OUT)
    node_emb = jax.random.normal(k_node, (B, N, NODE_C), jnp.float32)
    edge_emb = jax.random.normal(k_edge, (B, N, K, EDGE_IN), jnp.float32)
    E_idx = jax.random.randint(k_idx, (B, N, K), 0, N, jnp.int32)

    ref = reference_forward(params, node_emb, edge_emb, E_idx)

    # 1) f32 MXU path, default tiles: exact-math check of the kernel structure
    #    (zero-padded H / Co provably does not change f32 results).
    out_f32 = edge_transition_forward(params, node_emb, edge_emb, E_idx,
                                      mxu_dtype=jnp.float32)
    out_f32 = jax.block_until_ready(out_f32)
    assert out_f32.shape == (B, N, K, EDGE_OUT)
    assert jnp.allclose(out_f32, ref, atol=5e-4, rtol=5e-4), "mismatch (f32)"

    # 2) f32 path, small tiles + forced >=2 grid steps: exercises group padding
    #    and the multi-step parallel grid (both TensorCores on v7x).
    out_tiled = edge_transition_forward(params, node_emb, edge_emb, E_idx,
                                        mxu_dtype=jnp.float32,
                                        target_tile_rows=32, min_grid_steps=2)
    out_tiled = jax.block_until_ready(out_tiled)
    assert jnp.allclose(out_tiled, ref, atol=5e-4, rtol=5e-4), "mismatch (tiled)"

    # 3) bf16 MXU operands + f32 accumulation (production fast path).
    out_bf16 = edge_transition_forward(params, node_emb, edge_emb, E_idx,
                                       mxu_dtype=jnp.bfloat16)
    out_bf16 = jax.block_until_ready(out_bf16)
    max_err = float(jnp.max(jnp.abs(out_bf16 - ref)))
    assert max_err < 0.25, f"bf16 path too far from f32 reference: {max_err}"

    print("KERNEL_OK")
</pallas_src>

<mosaic_0001>
module attributes {stable_mosaic.version = 11 : i64} {
  func.func @_linear_kernel(%arg0: i32, %arg1: memref<14x32xf32, #tpu.memory_space<vmem>>, %arg2: memref<32x16xf32, #tpu.memory_space<vmem>>, %arg3: memref<1x16xf32, #tpu.memory_space<vmem>>, %arg4: memref<14x16xf32, #tpu.memory_space<vmem>>) attributes {dimension_semantics = [#tpu.dimension_semantics<parallel>], iteration_bounds = array<i64: 1>, scalar_prefetch = 0 : i64, scratch_operands = 0 : i64, tpu.core_type = #tpu.core_type<tc>, window_params = [{transform_indices = @transform_0, window_bounds = array<i64: 14, 32>}, {pipeline_mode = #tpu.pipeline_mode<synchronous>, transform_indices = @transform_1, window_bounds = array<i64: 32, 16>}, {pipeline_mode = #tpu.pipeline_mode<synchronous>, transform_indices = @transform_2, window_bounds = array<i64: 1, 16>}, {transform_indices = @transform_3, window_bounds = array<i64: 14, 16>}]} {
    %c0 = arith.constant 0 : index
    %c0_0 = arith.constant 0 : index
    %0 = vector.load %arg1[%c0, %c0_0] : memref<14x32xf32, #tpu.memory_space<vmem>>, vector<14x32xf32>
    %c0_1 = arith.constant 0 : index
    %c0_2 = arith.constant 0 : index
    %1 = vector.load %arg2[%c0_1, %c0_2] : memref<32x16xf32, #tpu.memory_space<vmem>>, vector<32x16xf32>
    %cst = arith.constant dense<0.000000e+00> : vector<14x16xf32>
    %2 = tpu.matmul %0, %1, %cst {dimension_numbers = #tpu.dot_dimension_numbers<[1], [0], [0], [1], [0, 0, 1, 1], [], []>} : vector<14x32xf32>, vector<32x16xf32>, vector<14x16xf32> -> vector<14x16xf32>
    %c0_3 = arith.constant 0 : index
    %c0_4 = arith.constant 0 : index
    %3 = vector.load %arg3[%c0_3, %c0_4] : memref<1x16xf32, #tpu.memory_space<vmem>>, vector<1x16xf32>
    %4 = vector.broadcast %3 : vector<1x16xf32> to vector<14x16xf32>
    %5 = arith.addf %2, %4 : vector<14x16xf32>
    %c0_5 = arith.constant 0 : index
    %c0_6 = arith.constant 0 : index
    %6 = vector.load %arg4[%c0_5, %c0_6] : memref<14x16xf32, #tpu.memory_space<vmem>>, vector<14x16xf32>
    tpu.vector_store %arg4[%c0_5, %c0_6], %5 {strides = array<i32>} : memref<14x16xf32, #tpu.memory_space<vmem>>, vector<14x16xf32>,
    return
  }
  func.func @transform_0(%arg0: i32) -> (i32, i32) {
    %c0_i32 = arith.constant 0 : i32
    %c0_i32_0 = arith.constant 0 : i32
    return %arg0, %c0_i32 : i32, i32
  }
  func.func @transform_1(%arg0: i32) -> (i32, i32) {
    %c0_i32 = arith.constant 0 : i32
    %c0_i32_0 = arith.constant 0 : i32
    %c0_i32_1 = arith.constant 0 : i32
    return %c0_i32, %c0_i32_0 : i32, i32
  }
  func.func @transform_2(%arg0: i32) -> (i32, i32) {
    %c0_i32 = arith.constant 0 : i32
    %c0_i32_0 = arith.constant 0 : i32
    %c0_i32_1 = arith.constant 0 : i32
    return %c0_i32, %c0_i32_0 : i32, i32
  }
  func.func @transform_3(%arg0: i32) -> (i32, i32) {
    %c0_i32 = arith.constant 0 : i32
    %c0_i32_0 = arith.constant 0 : i32
    return %arg0, %c0_i32 : i32, i32
  }
}

</mosaic_0001>

<llo_original>
// kernel: tpu_custom_call.1
$region0: #{tpu_custom_call.1}
  #allocation0 [shape = 'u32[]', space=smem, size = 0x4, offset = 0x4, fixed_abs, tag = 'smem constant byte address 0x4 - core index']
  #allocation1 [shape = 'u32[144,128]{1,0:T(1,128)}', space=vmem, size = 0x12000, scoped, tag = 'internal scratch']
  %s0 = inlined_call_operand.vmem [shape: f32[14,32], index: 0, kind: input, shape index: {}]
  %s1 = inlined_call_operand.vmem [shape: f32[32,16], index: 1, kind: input, shape index: {}]
  %s2 = inlined_call_operand.vmem [shape: f32[1,16], index: 2, kind: input, shape index: {}]
  %s3 = inlined_call_operand.hbm [shape: f32[14,16], index: 3, kind: output, shape index: {}]
  %s4 = sld [smem:[#allocation0]]
  $region22: #{tpu_custom_call.1} parent=0
    _
  %s6 = ssub.s32 1, %s4
  %s7 = scalar_select 0, %s6, %s4
  $region1: #{tpu_custom_call.1} parent=0
    #allocation2 [shape = 'u8[8192]{0}', space=vmem, size = 0x2000, scoped, tag = 'output window, operand 0, single buffered']
    #allocation3 [shape = 's32[1]{0}', space=sflag, size = 0x4, scoped, tag = 'scoped memory for tpu_custom_call.1']
    %8 = vsyncpa [#allocation3], 0
    // Predicated region
    $region2: #{tpu_custom_call.1} parent=1 // pred_check
      _
    $region3: #{tpu_custom_call.1} parent=1 // pred_check_branch
      %10 = sbr.rel (0) target = $region5
    $region4: #{tpu_custom_call.1} parent=1 // pred_region
      _
    $region5: #{tpu_custom_call.1} parent=1 // pred_fallthru
      _
    // Predicated region
    $region6: #{tpu_custom_call.1} parent=1 // pred_check
      _
    $region7: #{tpu_custom_call.1} parent=1 // pred_check_branch
      %12 = sbr.rel (0) target = $region9
    $region8: #{tpu_custom_call.1} parent=1 // pred_region
      _
    $region9: #{tpu_custom_call.1} parent=1 // pred_fallthru
      _
    // Predicated region
    $region10: #{tpu_custom_call.1} parent=1 // pred_check
      _
    $region11: #{tpu_custom_call.1} parent=1 // pred_check_branch
      %14 = sbr.rel (0) target = $region13
    $region12: #{tpu_custom_call.1} parent=1 // pred_region
      _
    $region13: #{tpu_custom_call.1} parent=1 // pred_fallthru
      _
    %v15 = vld [vmem:[%s0] sm:$0xff]
    %v16 = vld [vmem:[%s0 + $0x8] sm:$0x3f]
    %v17 = vld [vmem:[%s1] sm:$0xff]
    %v18 = vld [vmem:[%s1 + $0x8] sm:$0xff]
    %v19 = vld [vmem:[%s1 + $0x10] sm:$0xff]
    %v20 = vld [vmem:[%s1 + $0x18] sm:$0xff]
    %v21 = vld [vmem:[%s2] sm:$0x1]
    %v23 = vlaneseq
    %v24 = vshrl.u32 %v23, 7
    %v25 = vsub.s32 0, %v24
    %v26 = vrot.slane %v21, %v25
    %vm28 = vcmask 261120
    %v30 = vsel %vm28, %v15, 0
    %v33 = vsel %vm28, %v16, 0
    %35 = vmatprep.subr.mxu0 0.0
    %36 = vmatpush1.msra.mxu0 0.0
    %37 = vmatprep.subr.mxu0 0.0
    %38 = vmatpush1.msra.mxu0 0.0
    %39 = vmatprep.subr.mxu0 0.0
    %40 = vmatpush1.msra.mxu0 0.0
    %41 = vmatprep.subr.mxu0 0.0
    %42 = vmatpush1.msra.mxu0 0.0
    %43 = vmatprep.subr.mxu0 0.0
    %44 = vmatpush1.msra.mxu0 0.0
    %45 = vmatprep.subr.mxu0 0.0
    %46 = vmatpush1.msra.mxu0 0.0
    %47 = vmatprep.subr.mxu0 0.0
    %48 = vmatpush1.msra.mxu0 0.0
    %49 = vmatprep.subr.mxu0 0.0
    %50 = vmatpush1.msra.mxu0 0.0
    %51 = vmatprep.subr.mxu0 0.0
    %52 = vmatpush1.msra.mxu0 0.0
    %53 = vmatprep.subr.mxu0 0.0
    %54 = vmatpush1.msra.mxu0 0.0
    %55 = vmatprep.subr.mxu0 0.0
    %56 = vmatpush1.msra.mxu0 0.0
    %57 = vmatprep.subr.mxu0 0.0
    %58 = vmatpush1.msra.mxu0 0.0
    %59 = vmatprep.subr.mxu0 0.0
    %60 = vmatpush1.msra.mxu0 %v20
    %61 = vmatprep.subr.mxu0 0.0
    %62 = vmatpush1.msra.mxu0 %v19
    %63 = vmatprep.subr.mxu0 0.0
    %64 = vmatpush1.msra.mxu0 %v18
    %65 = vmatprep.subr.mxu0 0.0
    %66 = vmatpush1.msra.mxu0 %v17
    %67 = vmatprep.subr.mxu0 0.0
    %68 = vmatpush2.msra.mxu0 0.0
    %69 = vmatprep.subr.mxu0 0.0
    %70 = vmatpush2.msra.mxu0 0.0
    %71 = vmatprep.subr.mxu0 0.0
    %72 = vmatpush2.msra.mxu0 0.0
    %73 = vmatprep.subr.mxu0 0.0
    %74 = vmatpush2.msra.mxu0 0.0
    %75 = vmatprep.subr.mxu0 0.0
    %76 = vmatpush2.msra.mxu0 0.0
    %77 = vmatprep.subr.mxu0 0.0
    %78 = vmatpush2.msra.mxu0 0.0
    %79 = vmatprep.subr.mxu0 0.0
    %80 = vmatpush2.msra.mxu0 0.0
    %81 = vmatprep.subr.mxu0 0.0
    %82 = vmatpush2.msra.mxu0 0.0
    %83 = vmatprep.subr.mxu0 0.0
    %84 = vmatpush2.msra.mxu0 0.0
    %85 = vmatprep.subr.mxu0 0.0
    %86 = vmatpush2.msra.mxu0 0.0
    %87 = vmatprep.subr.mxu0 0.0
    %88 = vmatpush2.msra.mxu0 0.0
    %89 = vmatprep.subr.mxu0 0.0
    %90 = vmatpush2.msra.mxu0 0.0
    %91 = vmatprep.subr.mxu0 0.0
    %92 = vmatpush2.msra.mxu0 0.0
    %93 = vmatprep.subr.mxu0 0.0
    %94 = vmatpush2.msra.mxu0 0.0
    %95 = vmatprep.subr.mxu0 0.0
    %96 = vmatpush2.msra.mxu0 0.0
    %97 = vmatprep.subr.mxu0 0.0
    %98 = vmatpush2.msra.mxu0 0.0
    %99 = vmatprep.mubr.f32.mxu0 0.0
    %100 = vmatmul.mubr.f32.gmra.mxu0 %v30
    %v101 = vpop.f32.mrf.mxu0
    %v102 = vadd.f32 %v26, %v101
    %v103 = vpop.f32.mrf.mxu0
    %104 = vmatprep.mubr.f32.mxu0 0.0
    %105 = vmatmul.mubr.f32.gmra.mxu0 %v33
    %v106 = vpop.f32.mrf.mxu0
    %v107 = vadd.f32 %v26, %v106
    %v108 = vpop.f32.mrf.mxu0
    %109 = vdwg.mxu0
    %vm110 = vcmask 130048
    %111 = vst.msk [vmem:[#allocation2] sm:$0xff] %vm110, %v102
    %vm112 = vcmask 128000
    %113 = vst.msk [vmem:[#allocation2 + $0x8] sm:$0x3f] %vm112, %v107
    // Predicated region
    $region14: #{tpu_custom_call.1} parent=1 // pred_check
      _
    $region15: #{tpu_custom_call.1} parent=1 // pred_check_branch
      %115 = sbr.rel (0) target = $region17
    $region16: #{tpu_custom_call.1} parent=1 // pred_region
      %s117 = ssub.s32 256, 256
      %118 = vsyncadd [#allocation3], %s117
      %s119 = sshll.u32 [#allocation2], 4
      %s120 = int_to_ptr.vmem [resolvable:$true] %s119
      %125 = dma.vmem_to_hbm [thread:$0]  %s120, 256, %s3, [#allocation3], 128, 128, 8
    $region17: #{tpu_custom_call.1} parent=1 // pred_fallthru
      _
    // Predicated region
    $region18: #{tpu_custom_call.1} parent=1 // pred_check
      _
    $region19: #{tpu_custom_call.1} parent=1 // pred_check_branch
      %127 = sbr.rel (0) target = $region21
    $region20: #{tpu_custom_call.1} parent=1 // pred_region
      %128 = dma.done [#allocation3], 256
    $region21: #{tpu_custom_call.1} parent=1 // pred_fallthru
      _
    %129 = vsyncpa [#allocation3], 1

</llo_original>
